<compile_context>
chip_gen: v7x
topology: tpu7x:2x2x1
jax: 0.10.0
libtpu: 0.0.40
codegen_flags: <defaults>
</compile_context>

<pallas_src>
import jax
import jax.numpy as jnp
from jax.experimental import pallas as pl
from jax.experimental.pallas import tpu as pltpu

LANES = 128                       # lane (fast) axis width
_TARGET_BLOCK_BYTES = 1 << 20     # ~1 MiB per buffer -> ~4 MiB live w/ dbl-buffering


def _sublane_multiple(dtype) -> int:
    """Minimum second-to-last tile dim for this dtype (8 f32, 16 bf16, 32 int8/fp8)."""
    itemsize = jnp.dtype(dtype).itemsize
    return max(8, 32 // itemsize)


def _identity_kernel(x_ref, o_ref):
    # normal_positive_loss.forward(x) == x : straight copy of the tile.
    o_ref[...] = x_ref[...]


def _pallas_identity_2d(x2d):
    rows, lanes = x2d.shape
    dtype = x2d.dtype
    itemsize = jnp.dtype(dtype).itemsize
    sub = _sublane_multiple(dtype)

    # Large dtype-aware block: ~1 MiB per buffer, rounded to the sublane tile,
    # capped at the (rounded-up) number of rows actually present so tiny inputs
    # don't allocate oversized VMEM buffers.
    block_rows = max(sub, (_TARGET_BLOCK_BYTES // (lanes * itemsize)) // sub * sub)
    rows_rounded = pl.cdiv(rows, sub) * sub
    block_rows = min(block_rows, rows_rounded)

    grid = (pl.cdiv(rows, block_rows),)   # ragged last block handled by Pallas
    nbytes = rows * lanes * itemsize

    return pl.pallas_call(
        _identity_kernel,
        out_shape=jax.ShapeDtypeStruct((rows, lanes), dtype),
        grid_spec=pltpu.PrefetchScalarGridSpec(
            num_scalar_prefetch=0,
            grid=grid,
            in_specs=[pl.BlockSpec((block_rows, lanes), lambda i: (i, 0))],
            out_specs=pl.BlockSpec((block_rows, lanes), lambda i: (i, 0)),
        ),
        compiler_params=pltpu.CompilerParams(
            dimension_semantics=("parallel",),   # shards grid across v7x's 2 TCs
        ),
        cost_estimate=pl.CostEstimate(
            flops=0, transcendentals=0, bytes_accessed=2 * nbytes),
    )(x2d)


@jax.jit
def _forward(x):
    orig_shape = x.shape
    total = x.size
    flat = x.reshape(-1)

    # Pad only to a multiple of 128 lanes (fast path: no copy when already aligned).
    pad = (-total) % LANES
    if pad:
        flat = jnp.pad(flat, (0, pad))
    rows = flat.size // LANES

    out2d = _pallas_identity_2d(flat.reshape(rows, LANES))

    out_flat = out2d.reshape(-1)
    if pad:
        out_flat = out_flat[:total]
    return out_flat.reshape(orig_shape)


def normal_positive_loss(x, margin=1):
    """Forward pass of the torch `normal_positive_loss` module: returns x unchanged.

    `margin` is kept for API parity with the torch module but is unused in forward.
    """
    del margin
    return _forward(x)


if __name__ == "__main__":
    key = jax.random.PRNGKey(0)
    # NCHW input, same small shape as the torch usage.
    x = jax.random.uniform(key, (2, 4, 16, 16), dtype=jnp.float32,
                           minval=0.1, maxval=2.0)

    out = normal_positive_loss(x, margin=1)
    out = jax.block_until_ready(out)

    assert out.shape == x.shape and out.dtype == x.dtype
    assert jnp.array_equal(out, x), "mismatch vs reference (identity)"

    print("KERNEL_OK")
</pallas_src>

<mosaic_0001>
module attributes {stable_mosaic.version = 11 : i64} {
  func.func @_identity_kernel(%arg0: i32, %arg1: memref<16x128xf32, #tpu.memory_space<vmem>>, %arg2: memref<16x128xf32, #tpu.memory_space<vmem>>) attributes {dimension_semantics = [#tpu.dimension_semantics<parallel>], iteration_bounds = array<i64: 1>, scalar_prefetch = 0 : i64, scratch_operands = 0 : i64, tpu.core_type = #tpu.core_type<tc>, window_params = [{transform_indices = @transform_0, window_bounds = array<i64: 16, 128>}, {transform_indices = @transform_1, window_bounds = array<i64: 16, 128>}]} {
    %c0 = arith.constant 0 : index
    %c0_0 = arith.constant 0 : index
    %0 = vector.load %arg1[%c0, %c0_0] : memref<16x128xf32, #tpu.memory_space<vmem>>, vector<16x128xf32>
    %c0_1 = arith.constant 0 : index
    %c0_2 = arith.constant 0 : index
    %1 = vector.load %arg2[%c0_1, %c0_2] : memref<16x128xf32, #tpu.memory_space<vmem>>, vector<16x128xf32>
    tpu.vector_store %arg2[%c0_1, %c0_2], %0 {strides = array<i32>} : memref<16x128xf32, #tpu.memory_space<vmem>>, vector<16x128xf32>,
    return
  }
  func.func @transform_0(%arg0: i32) -> (i32, i32) {
    %c0_i32 = arith.constant 0 : i32
    %c0_i32_0 = arith.constant 0 : i32
    return %arg0, %c0_i32 : i32, i32
  }
  func.func @transform_1(%arg0: i32) -> (i32, i32) {
    %c0_i32 = arith.constant 0 : i32
    %c0_i32_0 = arith.constant 0 : i32
    return %arg0, %c0_i32 : i32, i32
  }
}

</mosaic_0001>

<llo_original>
// kernel: _forward.1
$region0: #{_forward.1}
  #allocation0 [shape = 'u32[]', space=smem, size = 0x4, offset = 0x4, fixed_abs, tag = 'smem constant byte address 0x4 - core index']
  #allocation1 [shape = 'u32[144,128]{1,0:T(1,128)}', space=vmem, size = 0x12000, scoped, tag = 'internal scratch']
  %s0 = inlined_call_operand.vmem [shape: f32[16,128], index: 0, kind: input, shape index: {}]
  %s1 = inlined_call_operand.vmem [shape: f32[16,128], index: 1, kind: output, shape index: {}]
  %s2 = sld [smem:[#allocation0]]
  $region14: #{_forward.1} parent=0
    _
  %s4 = ssub.s32 1, %s2
  %s5 = scalar_select 0, %s4, %s2
  // Predicated region
  $region2: #{_forward.1} parent=0 // pred_check
    _
  $region3: #{_forward.1} parent=0 // pred_check_branch
    %7 = sbr.rel (0) target = $region5
  $region4: #{_forward.1} parent=0 // pred_region
    _
  $region5: #{_forward.1} parent=0 // pred_fallthru
    _
  %v8 = vld [vmem:[%s0] sm:$0xff]
  %v9 = vld [vmem:[%s0 + $0x8] sm:$0xff]
  %10 = vst [vmem:[%s1] sm:$0xff] %v8
  %11 = vst [vmem:[%s1 + $0x8] sm:$0xff] %v9
  // Predicated region
  $region6: #{_forward.1} parent=0 // pred_check
    _
  $region7: #{_forward.1} parent=0 // pred_check_branch
    %13 = sbr.rel (0) target = $region9
  $region8: #{_forward.1} parent=0 // pred_region
    _
  $region9: #{_forward.1} parent=0 // pred_fallthru
    _
  // Predicated region
  $region10: #{_forward.1} parent=0 // pred_check
    _
  $region11: #{_forward.1} parent=0 // pred_check_branch
    %15 = sbr.rel (0) target = $region13
  $region12: #{_forward.1} parent=0 // pred_region
    _
  $region13: #{_forward.1} parent=0 // pred_fallthru
    _

</llo_original>
